<compile_context>
chip_gen: v7x
topology: tpu7x:2x2x1
jax: 0.10.0
libtpu: 0.0.40
codegen_flags: <defaults>
</compile_context>

<pallas_src>
import functools

import jax
import jax.numpy as jnp
from jax import lax
from jax.experimental import pallas as pl
from jax.experimental.pallas import tpu as pltpu


def _fps_kernel(first_idx_ref, xt_ref, out_ref, *,
                num_points, num_samples, samples_padded, batch_tile):
    """One grid step = one tile of `batch_tile` batch elements (full FPS loop).

    xt_ref : (BT, D, N) f32 — point features, point axis N lane-dense.
    out_ref: (1, BT, S_pad) i32 — selected indices (padded lanes stay zero).
    """
    g = pl.program_id(0)
    xt = xt_ref[...]                                   # (BT, D, N)
    N, S, BT = num_points, num_samples, batch_tile

    # ||x||^2 per point, computed once per tile (lane-dense result).
    x_sq = jnp.sum(xt * xt, axis=1)                    # (BT, N)

    lane_iota = lax.broadcasted_iota(jnp.int32, (BT, N), 1)            # point id
    slot_iota = lax.broadcasted_iota(jnp.int32, (BT, samples_padded), 1)
    row_iota = lax.broadcasted_iota(jnp.int32, (BT, 1), 0)

    # Initial per-row index from the SMEM scalar-prefetch vector.
    idx0 = jnp.zeros((BT, 1), dtype=jnp.int32)
    for b in range(BT):                                # BT is small & static
        fi = first_idx_ref[g * BT + b]
        idx0 = jnp.where(row_iota == b, fi, idx0)

    min0 = jnp.full((BT, N), jnp.inf, dtype=jnp.float32)
    out0 = jnp.zeros((BT, samples_padded), dtype=jnp.int32)

    def body(i, carry):
        idx, min_d2, out_acc = carry                   # (BT,1) (BT,N) (BT,S_pad)
        # 1) record the current index into slot i
        out_acc = jnp.where(slot_iota == i, idx, out_acc)
        # 2) gather the centroid via a masked lane reduction (N on lanes).
        #    D is tiny for point clouds, so the D-contraction below stays on
        #    VPU/XLU sublanes rather than being pushed to the MXU.
        onehot = lane_iota == idx                      # (BT, N) bool
        c = jnp.sum(jnp.where(onehot[:, None, :], xt, 0.0),
                    axis=2, keepdims=True)             # (BT, D, 1)  centroid
        c_sq = jnp.sum(jnp.where(onehot, x_sq, 0.0),
                       axis=1, keepdims=True)          # (BT, 1)     == ||c||^2
        # 3) squared distance of every point to the centroid:
        #    d^2 = ||x||^2 - 2<x,c> + ||c||^2   (sqrt dropped: monotone).
        #    fp cancellation may give a tiny negative d^2 at the selected
        #    point itself — harmless for the argmax below.
        xc = jnp.sum(xt * c, axis=1)                   # (BT, N)
        d2 = x_sq - 2.0 * xc + c_sq                    # (BT, N)
        # 4) running minimum squared distance to the selected set
        min_d2 = jnp.minimum(min_d2, d2)
        # 5) next index = first argmax of min_d2 (matches torch/jnp argmax)
        m = jnp.max(min_d2, axis=1, keepdims=True)     # (BT, 1)
        cand = jnp.where(min_d2 == m, lane_iota, N)
        idx = jnp.min(cand, axis=1, keepdims=True).astype(jnp.int32)
        return idx, min_d2, out_acc

    _, _, out_acc = lax.fori_loop(0, S, body, (idx0, min0, out0),
                                  unroll=(S <= 32))
    out_ref[0] = out_acc


def _pick_batch_tile(batch_size):
    """Largest divisor of B that is <= 8, preferring a grid of >= 2 steps
    (keeps both v7x TensorCores busy when possible)."""
    divisors = [t for t in range(min(8, batch_size), 0, -1) if batch_size % t == 0]
    for t in divisors:
        if batch_size // t >= 2:
            return t
    return divisors[0]


def sampling_fps(x, first_idx, num_samples, batch_tile=None):
    """Pallas FPS: x (B, N, D) f32, first_idx (B,) i32 -> (B, num_samples) i32."""
    B, N, D = x.shape
    if batch_tile is None:
        batch_tile = _pick_batch_tile(B)
    assert B % batch_tile == 0, "batch_tile must divide the batch size"
    grid = B // batch_tile
    s_pad = ((num_samples + 127) // 128) * 128         # lane-dense output slab

    # Layout plumbing in the wrapper: present the point axis lane-dense.
    xt = jnp.swapaxes(x, 1, 2).astype(jnp.float32)     # (B, D, N)

    kernel = functools.partial(
        _fps_kernel, num_points=N, num_samples=num_samples,
        samples_padded=s_pad, batch_tile=batch_tile)

    out = pl.pallas_call(
        kernel,
        out_shape=jax.ShapeDtypeStruct((grid, batch_tile, s_pad), jnp.int32),
        grid_spec=pltpu.PrefetchScalarGridSpec(
            num_scalar_prefetch=1,
            grid=(grid,),
            # The whole (BT, D, N) tile must stay resident for all S iterations;
            # for very large N on v7x (64 MiB VMEM) consider
            # pipeline_mode=pl.Buffered(1) or raising vmem_limit_bytes.
            in_specs=[pl.BlockSpec((batch_tile, D, N), lambda g, fi: (g, 0, 0))],
            out_specs=pl.BlockSpec((1, batch_tile, s_pad),
                                   lambda g, fi: (g, 0, 0)),
        ),
        compiler_params=pltpu.CompilerParams(
            dimension_semantics=("parallel",)),
    )(first_idx.astype(jnp.int32), xt)
    return out.reshape(B, s_pad)[:, :num_samples]


def sampling_ref(x, first_idx, num_samples):
    """Plain-JAX reference mirroring the PyTorch forward (sqrt-based)."""
    B, N, D = x.shape
    min_d = jnp.full((B, N), jnp.inf, dtype=jnp.float32)
    idx = first_idx.astype(jnp.int32)
    outs = []
    for _ in range(num_samples):
        outs.append(idx[:, None])
        gather_idx = jnp.repeat(idx[:, None, None], D, axis=2)
        centroid = jnp.take_along_axis(x, gather_idx, axis=1)          # (B, 1, D)
        d = jnp.sqrt(jnp.sum((x - centroid) ** 2, axis=2))             # (B, N)
        min_d = jnp.minimum(min_d, d)
        idx = jnp.argmax(min_d, axis=1).astype(jnp.int32)
    return jnp.concatenate(outs, axis=1)


if __name__ == "__main__":
    B, N, D = 4, 64, 8
    NUM_SAMPLES = 8  # nb_subsampled_points

    key = jax.random.PRNGKey(0)
    kx, ki = jax.random.split(key)
    x = jax.random.normal(kx, (B, N, D), dtype=jnp.float32)
    # PyTorch draws the first index with .random_(0, num_points); here we make
    # it deterministic via jax.random.
    first_idx = jax.random.randint(ki, (B,), 0, N, dtype=jnp.int32)

    out = sampling_fps(x, first_idx, NUM_SAMPLES)
    out = jax.block_until_ready(out)

    ref = sampling_ref(x, first_idx, NUM_SAMPLES)
    assert out.shape == (B, NUM_SAMPLES)
    assert bool(jnp.all(out == ref)), f"mismatch:\n{out}\nvs\n{ref}"

    print("KERNEL_OK")
</pallas_src>

<mosaic_0001>
module attributes {stable_mosaic.version = 11 : i64} {
  func.func @_fps_kernel(%arg0: i32, %arg1: memref<4xi32, #tpu.memory_space<smem>>, %arg2: memref<2x8x64xf32, #tpu.memory_space<vmem>>, %arg3: memref<1x2x128xi32, #tpu.memory_space<vmem>>) attributes {dimension_semantics = [#tpu.dimension_semantics<parallel>], iteration_bounds = array<i64: 2>, scalar_prefetch = 1 : i64, scratch_operands = 0 : i64, tpu.core_type = #tpu.core_type<tc>, window_params = [{transform_indices = @transform_0, window_bounds = array<i64: 2, 8, 64>}, {transform_indices = @transform_1, window_bounds = array<i64: 1, 2, 128>}]} {
    %c0 = arith.constant 0 : index
    %c0_0 = arith.constant 0 : index
    %c0_1 = arith.constant 0 : index
    %0 = vector.load %arg2[%c0, %c0_0, %c0_1] : memref<2x8x64xf32, #tpu.memory_space<vmem>>, vector<2x8x64xf32>
    %1 = arith.mulf %0, %0 : vector<2x8x64xf32>
    %cst = arith.constant dense<0.000000e+00> : vector<2x64xf32>
    %2 = vector.multi_reduction <add>, %1, %cst [1] : vector<2x8x64xf32> to vector<2x64xf32>
    %3 = tpu.iota {dimensions = array<i32: 1>} : vector<2x64xi32>
    %4 = tpu.iota {dimensions = array<i32: 1>} : vector<2x128xi32>
    %5 = tpu.iota {dimensions = array<i32: 0>} : vector<2x1xi32>
    %c0_i32 = arith.constant 0 : i32
    %6 = vector.broadcast %c0_i32 : i32 to vector<2x1xi32>
    %c2_i32 = arith.constant 2 : i32
    %7 = arith.muli %arg0, %c2_i32 : i32
    %c0_i32_2 = arith.constant 0 : i32
    %8 = arith.addi %7, %c0_i32_2 : i32
    %9 = arith.index_cast %8 : i32 to index
    %10 = memref.load %arg1[%9] : memref<4xi32, #tpu.memory_space<smem>>
    %c0_i32_3 = arith.constant 0 : i32
    %11 = vector.broadcast %c0_i32_3 : i32 to vector<2x1xi32>
    %12 = arith.cmpi eq, %5, %11 : vector<2x1xi32>
    %13 = vector.broadcast %10 : i32 to vector<2x1xi32>
    %14 = arith.select %12, %13, %6 : vector<2x1xi1>, vector<2x1xi32>
    %c2_i32_4 = arith.constant 2 : i32
    %15 = arith.muli %arg0, %c2_i32_4 : i32
    %c1_i32 = arith.constant 1 : i32
    %16 = arith.addi %15, %c1_i32 : i32
    %17 = arith.index_cast %16 : i32 to index
    %18 = memref.load %arg1[%17] : memref<4xi32, #tpu.memory_space<smem>>
    %c1_i32_5 = arith.constant 1 : i32
    %19 = vector.broadcast %c1_i32_5 : i32 to vector<2x1xi32>
    %20 = arith.cmpi eq, %5, %19 : vector<2x1xi32>
    %21 = vector.broadcast %18 : i32 to vector<2x1xi32>
    %22 = arith.select %20, %21, %14 : vector<2x1xi1>, vector<2x1xi32>
    %cst_6 = arith.constant 0x7F800000 : f32
    %23 = vector.broadcast %cst_6 : f32 to vector<2x64xf32>
    %c0_i32_7 = arith.constant 0 : i32
    %24 = vector.broadcast %c0_i32_7 : i32 to vector<2x128xi32>
    %c0_i32_8 = arith.constant 0 : i32
    %25 = vector.broadcast %c0_i32_8 : i32 to vector<2x128xi32>
    %26 = arith.cmpi eq, %4, %25 : vector<2x128xi32>
    %27 = vector.shape_cast %22 : vector<2x1xi32> to vector<2x1xi32>
    %28 = vector.broadcast %27 : vector<2x1xi32> to vector<2x128xi32>
    %29 = arith.select %26, %28, %24 : vector<2x128xi1>, vector<2x128xi32>
    %30 = vector.broadcast %22 : vector<2x1xi32> to vector<2x64xi32>
    %31 = arith.cmpi eq, %3, %30 : vector<2x64xi32>
    %32 = vector.shape_cast %31 : vector<2x64xi1> to vector<2x1x64xi1>
    %cst_9 = arith.constant 0.000000e+00 : f32
    %33 = vector.shape_cast %32 : vector<2x1x64xi1> to vector<2x1x64xi1>
    %34 = vector.broadcast %33 : vector<2x1x64xi1> to vector<2x8x64xi1>
    %35 = vector.broadcast %cst_9 : f32 to vector<2x8x64xf32>
    %36 = arith.select %34, %0, %35 : vector<2x8x64xi1>, vector<2x8x64xf32>
    %cst_10 = arith.constant dense<0.000000e+00> : vector<2x8xf32>
    %37 = vector.multi_reduction <add>, %36, %cst_10 [2] : vector<2x8x64xf32> to vector<2x8xf32>
    %38 = vector.shape_cast %37 : vector<2x8xf32> to vector<2x8x1xf32>
    %cst_11 = arith.constant 0.000000e+00 : f32
    %39 = vector.broadcast %cst_11 : f32 to vector<2x64xf32>
    %40 = arith.select %31, %2, %39 : vector<2x64xi1>, vector<2x64xf32>
    %cst_12 = arith.constant dense<0.000000e+00> : vector<2xf32>
    %41 = vector.multi_reduction <add>, %40, %cst_12 [1] : vector<2x64xf32> to vector<2xf32>
    %42 = vector.shape_cast %41 : vector<2xf32> to vector<2x1xf32>
    %43 = vector.broadcast %38 : vector<2x8x1xf32> to vector<2x8x64xf32>
    %44 = arith.mulf %0, %43 : vector<2x8x64xf32>
    %cst_13 = arith.constant dense<0.000000e+00> : vector<2x64xf32>
    %45 = vector.multi_reduction <add>, %44, %cst_13 [1] : vector<2x8x64xf32> to vector<2x64xf32>
    %cst_14 = arith.constant 2.000000e+00 : f32
    %46 = vector.broadcast %cst_14 : f32 to vector<2x64xf32>
    %47 = arith.mulf %46, %45 : vector<2x64xf32>
    %48 = arith.subf %2, %47 : vector<2x64xf32>
    %49 = vector.broadcast %42 : vector<2x1xf32> to vector<2x64xf32>
    %50 = arith.addf %48, %49 : vector<2x64xf32>
    %51 = arith.minimumf %23, %50 : vector<2x64xf32>
    %cst_15 = arith.constant dense<0xFF800000> : vector<2xf32>
    %52 = vector.multi_reduction <maximumf>, %51, %cst_15 [1] : vector<2x64xf32> to vector<2xf32>
    %53 = vector.shape_cast %52 : vector<2xf32> to vector<2x1xf32>
    %54 = vector.broadcast %53 : vector<2x1xf32> to vector<2x64xf32>
    %55 = arith.cmpf oeq, %51, %54 : vector<2x64xf32>
    %c64_i32 = arith.constant 64 : i32
    %56 = vector.broadcast %c64_i32 : i32 to vector<2x64xi32>
    %57 = arith.select %55, %3, %56 : vector<2x64xi1>, vector<2x64xi32>
    %cst_16 = arith.constant dense<2147483647> : vector<2xi32>
    %58 = vector.multi_reduction <minsi>, %57, %cst_16 [1] : vector<2x64xi32> to vector<2xi32>
    %59 = vector.shape_cast %58 : vector<2xi32> to vector<2x1xi32>
    %c1_i32_17 = arith.constant 1 : i32
    %60 = vector.broadcast %c1_i32_17 : i32 to vector<2x128xi32>
    %61 = arith.cmpi eq, %4, %60 : vector<2x128xi32>
    %62 = vector.shape_cast %59 : vector<2x1xi32> to vector<2x1xi32>
    %63 = vector.broadcast %62 : vector<2x1xi32> to vector<2x128xi32>
    %64 = arith.select %61, %63, %29 : vector<2x128xi1>, vector<2x128xi32>
    %65 = vector.broadcast %59 : vector<2x1xi32> to vector<2x64xi32>
    %66 = arith.cmpi eq, %3, %65 : vector<2x64xi32>
    %67 = vector.shape_cast %66 : vector<2x64xi1> to vector<2x1x64xi1>
    %cst_18 = arith.constant 0.000000e+00 : f32
    %68 = vector.shape_cast %67 : vector<2x1x64xi1> to vector<2x1x64xi1>
    %69 = vector.broadcast %68 : vector<2x1x64xi1> to vector<2x8x64xi1>
    %70 = vector.broadcast %cst_18 : f32 to vector<2x8x64xf32>
    %71 = arith.select %69, %0, %70 : vector<2x8x64xi1>, vector<2x8x64xf32>
    %cst_19 = arith.constant dense<0.000000e+00> : vector<2x8xf32>
    %72 = vector.multi_reduction <add>, %71, %cst_19 [2] : vector<2x8x64xf32> to vector<2x8xf32>
    %73 = vector.shape_cast %72 : vector<2x8xf32> to vector<2x8x1xf32>
    %cst_20 = arith.constant 0.000000e+00 : f32
    %74 = vector.broadcast %cst_20 : f32 to vector<2x64xf32>
    %75 = arith.select %66, %2, %74 : vector<2x64xi1>, vector<2x64xf32>
    %cst_21 = arith.constant dense<0.000000e+00> : vector<2xf32>
    %76 = vector.multi_reduction <add>, %75, %cst_21 [1] : vector<2x64xf32> to vector<2xf32>
    %77 = vector.shape_cast %76 : vector<2xf32> to vector<2x1xf32>
    %78 = vector.broadcast %73 : vector<2x8x1xf32> to vector<2x8x64xf32>
    %79 = arith.mulf %0, %78 : vector<2x8x64xf32>
    %cst_22 = arith.constant dense<0.000000e+00> : vector<2x64xf32>
    %80 = vector.multi_reduction <add>, %79, %cst_22 [1] : vector<2x8x64xf32> to vector<2x64xf32>
    %cst_23 = arith.constant 2.000000e+00 : f32
    %81 = vector.broadcast %cst_23 : f32 to vector<2x64xf32>
    %82 = arith.mulf %81, %80 : vector<2x64xf32>
    %83 = arith.subf %2, %82 : vector<2x64xf32>
    %84 = vector.broadcast %77 : vector<2x1xf32> to vector<2x64xf32>
    %85 = arith.addf %83, %84 : vector<2x64xf32>
    %86 = arith.minimumf %51, %85 : vector<2x64xf32>
    %cst_24 = arith.constant dense<0xFF800000> : vector<2xf32>
    %87 = vector.multi_reduction <maximumf>, %86, %cst_24 [1] : vector<2x64xf32> to vector<2xf32>
    %88 = vector.shape_cast %87 : vector<2xf32> to vector<2x1xf32>
    %89 = vector.broadcast %88 : vector<2x1xf32> to vector<2x64xf32>
    %90 = arith.cmpf oeq, %86, %89 : vector<2x64xf32>
    %c64_i32_25 = arith.constant 64 : i32
    %91 = vector.broadcast %c64_i32_25 : i32 to vector<2x64xi32>
    %92 = arith.select %90, %3, %91 : vector<2x64xi1>, vector<2x64xi32>
    %cst_26 = arith.constant dense<2147483647> : vector<2xi32>
    %93 = vector.multi_reduction <minsi>, %92, %cst_26 [1] : vector<2x64xi32> to vector<2xi32>
    %94 = vector.shape_cast %93 : vector<2xi32> to vector<2x1xi32>
    %c2_i32_27 = arith.constant 2 : i32
    %95 = vector.broadcast %c2_i32_27 : i32 to vector<2x128xi32>
    %96 = arith.cmpi eq, %4, %95 : vector<2x128xi32>
    %97 = vector.shape_cast %94 : vector<2x1xi32> to vector<2x1xi32>
    %98 = vector.broadcast %97 : vector<2x1xi32> to vector<2x128xi32>
    %99 = arith.select %96, %98, %64 : vector<2x128xi1>, vector<2x128xi32>
    %100 = vector.broadcast %94 : vector<2x1xi32> to vector<2x64xi32>
    %101 = arith.cmpi eq, %3, %100 : vector<2x64xi32>
    %102 = vector.shape_cast %101 : vector<2x64xi1> to vector<2x1x64xi1>
    %cst_28 = arith.constant 0.000000e+00 : f32
    %103 = vector.shape_cast %102 : vector<2x1x64xi1> to vector<2x1x64xi1>
    %104 = vector.broadcast %103 : vector<2x1x64xi1> to vector<2x8x64xi1>
    %105 = vector.broadcast %cst_28 : f32 to vector<2x8x64xf32>
    %106 = arith.select %104, %0, %105 : vector<2x8x64xi1>, vector<2x8x64xf32>
    %cst_29 = arith.constant dense<0.000000e+00> : vector<2x8xf32>
    %107 = vector.multi_reduction <add>, %106, %cst_29 [2] : vector<2x8x64xf32> to vector<2x8xf32>
    %108 = vector.shape_cast %107 : vector<2x8xf32> to vector<2x8x1xf32>
    %cst_30 = arith.constant 0.000000e+00 : f32
    %109 = vector.broadcast %cst_30 : f32 to vector<2x64xf32>
    %110 = arith.select %101, %2, %109 : vector<2x64xi1>, vector<2x64xf32>
    %cst_31 = arith.constant dense<0.000000e+00> : vector<2xf32>
    %111 = vector.multi_reduction <add>, %110, %cst_31 [1] : vector<2x64xf32> to vector<2xf32>
    %112 = vector.shape_cast %111 : vector<2xf32> to vector<2x1xf32>
    %113 = vector.broadcast %108 : vector<2x8x1xf32> to vector<2x8x64xf32>
    %114 = arith.mulf %0, %113 : vector<2x8x64xf32>
    %cst_32 = arith.constant dense<0.000000e+00> : vector<2x64xf32>
    %115 = vector.multi_reduction <add>, %114, %cst_32 [1] : vector<2x8x64xf32> to vector<2x64xf32>
    %cst_33 = arith.constant 2.000000e+00 : f32
    %116 = vector.broadcast %cst_33 : f32 to vector<2x64xf32>
    %117 = arith.mulf %116, %115 : vector<2x64xf32>
    %118 = arith.subf %2, %117 : vector<2x64xf32>
    %119 = vector.broadcast %112 : vector<2x1xf32> to vector<2x64xf32>
    %120 = arith.addf %118, %119 : vector<2x64xf32>
    %121 = arith.minimumf %86, %120 : vector<2x64xf32>
    %cst_34 = arith.constant dense<0xFF800000> : vector<2xf32>
    %122 = vector.multi_reduction <maximumf>, %121, %cst_34 [1] : vector<2x64xf32> to vector<2xf32>
    %123 = vector.shape_cast %122 : vector<2xf32> to vector<2x1xf32>
    %124 = vector.broadcast %123 : vector<2x1xf32> to vector<2x64xf32>
    %125 = arith.cmpf oeq, %121, %124 : vector<2x64xf32>
    %c64_i32_35 = arith.constant 64 : i32
    %126 = vector.broadcast %c64_i32_35 : i32 to vector<2x64xi32>
    %127 = arith.select %125, %3, %126 : vector<2x64xi1>, vector<2x64xi32>
    %cst_36 = arith.constant dense<2147483647> : vector<2xi32>
    %128 = vector.multi_reduction <minsi>, %127, %cst_36 [1] : vector<2x64xi32> to vector<2xi32>
    %129 = vector.shape_cast %128 : vector<2xi32> to vector<2x1xi32>
    %c3_i32 = arith.constant 3 : i32
    %130 = vector.broadcast %c3_i32 : i32 to vector<2x128xi32>
    %131 = arith.cmpi eq, %4, %130 : vector<2x128xi32>
    %132 = vector.shape_cast %129 : vector<2x1xi32> to vector<2x1xi32>
    %133 = vector.broadcast %132 : vector<2x1xi32> to vector<2x128xi32>
    %134 = arith.select %131, %133, %99 : vector<2x128xi1>, vector<2x128xi32>
    %135 = vector.broadcast %129 : vector<2x1xi32> to vector<2x64xi32>
    %136 = arith.cmpi eq, %3, %135 : vector<2x64xi32>
    %137 = vector.shape_cast %136 : vector<2x64xi1> to vector<2x1x64xi1>
    %cst_37 = arith.constant 0.000000e+00 : f32
    %138 = vector.shape_cast %137 : vector<2x1x64xi1> to vector<2x1x64xi1>
    %139 = vector.broadcast %138 : vector<2x1x64xi1> to vector<2x8x64xi1>
    %140 = vector.broadcast %cst_37 : f32 to vector<2x8x64xf32>
    %141 = arith.select %139, %0, %140 : vector<2x8x64xi1>, vector<2x8x64xf32>
    %cst_38 = arith.constant dense<0.000000e+00> : vector<2x8xf32>
    %142 = vector.multi_reduction <add>, %141, %cst_38 [2] : vector<2x8x64xf32> to vector<2x8xf32>
    %143 = vector.shape_cast %142 : vector<2x8xf32> to vector<2x8x1xf32>
    %cst_39 = arith.constant 0.000000e+00 : f32
    %144 = vector.broadcast %cst_39 : f32 to vector<2x64xf32>
    %145 = arith.select %136, %2, %144 : vector<2x64xi1>, vector<2x64xf32>
    %cst_40 = arith.constant dense<0.000000e+00> : vector<2xf32>
    %146 = vector.multi_reduction <add>, %145, %cst_40 [1] : vector<2x64xf32> to vector<2xf32>
    %147 = vector.shape_cast %146 : vector<2xf32> to vector<2x1xf32>
    %148 = vector.broadcast %143 : vector<2x8x1xf32> to vector<2x8x64xf32>
    %149 = arith.mulf %0, %148 : vector<2x8x64xf32>
    %cst_41 = arith.constant dense<0.000000e+00> : vector<2x64xf32>
    %150 = vector.multi_reduction <add>, %149, %cst_41 [1] : vector<2x8x64xf32> to vector<2x64xf32>
    %cst_42 = arith.constant 2.000000e+00 : f32
    %151 = vector.broadcast %cst_42 : f32 to vector<2x64xf32>
    %152 = arith.mulf %151, %150 : vector<2x64xf32>
    %153 = arith.subf %2, %152 : vector<2x64xf32>
    %154 = vector.broadcast %147 : vector<2x1xf32> to vector<2x64xf32>
    %155 = arith.addf %153, %154 : vector<2x64xf32>
    %156 = arith.minimumf %121, %155 : vector<2x64xf32>
    %cst_43 = arith.constant dense<0xFF800000> : vector<2xf32>
    %157 = vector.multi_reduction <maximumf>, %156, %cst_43 [1] : vector<2x64xf32> to vector<2xf32>
    %158 = vector.shape_cast %157 : vector<2xf32> to vector<2x1xf32>
    %159 = vector.broadcast %158 : vector<2x1xf32> to vector<2x64xf32>
    %160 = arith.cmpf oeq, %156, %159 : vector<2x64xf32>
    %c64_i32_44 = arith.constant 64 : i32
    %161 = vector.broadcast %c64_i32_44 : i32 to vector<2x64xi32>
    %162 = arith.select %160, %3, %161 : vector<2x64xi1>, vector<2x64xi32>
    %cst_45 = arith.constant dense<2147483647> : vector<2xi32>
    %163 = vector.multi_reduction <minsi>, %162, %cst_45 [1] : vector<2x64xi32> to vector<2xi32>
    %164 = vector.shape_cast %163 : vector<2xi32> to vector<2x1xi32>
    %c4_i32 = arith.constant 4 : i32
    %165 = vector.broadcast %c4_i32 : i32 to vector<2x128xi32>
    %166 = arith.cmpi eq, %4, %165 : vector<2x128xi32>
    %167 = vector.shape_cast %164 : vector<2x1xi32> to vector<2x1xi32>
    %168 = vector.broadcast %167 : vector<2x1xi32> to vector<2x128xi32>
    %169 = arith.select %166, %168, %134 : vector<2x128xi1>, vector<2x128xi32>
    %170 = vector.broadcast %164 : vector<2x1xi32> to vector<2x64xi32>
    %171 = arith.cmpi eq, %3, %170 : vector<2x64xi32>
    %172 = vector.shape_cast %171 : vector<2x64xi1> to vector<2x1x64xi1>
    %cst_46 = arith.constant 0.000000e+00 : f32
    %173 = vector.shape_cast %172 : vector<2x1x64xi1> to vector<2x1x64xi1>
    %174 = vector.broadcast %173 : vector<2x1x64xi1> to vector<2x8x64xi1>
    %175 = vector.broadcast %cst_46 : f32 to vector<2x8x64xf32>
    %176 = arith.select %174, %0, %175 : vector<2x8x64xi1>, vector<2x8x64xf32>
    %cst_47 = arith.constant dense<0.000000e+00> : vector<2x8xf32>
    %177 = vector.multi_reduction <add>, %176, %cst_47 [2] : vector<2x8x64xf32> to vector<2x8xf32>
    %178 = vector.shape_cast %177 : vector<2x8xf32> to vector<2x8x1xf32>
    %cst_48 = arith.constant 0.000000e+00 : f32
    %179 = vector.broadcast %cst_48 : f32 to vector<2x64xf32>
    %180 = arith.select %171, %2, %179 : vector<2x64xi1>, vector<2x64xf32>
    %cst_49 = arith.constant dense<0.000000e+00> : vector<2xf32>
    %181 = vector.multi_reduction <add>, %180, %cst_49 [1] : vector<2x64xf32> to vector<2xf32>
    %182 = vector.shape_cast %181 : vector<2xf32> to vector<2x1xf32>
    %183 = vector.broadcast %178 : vector<2x8x1xf32> to vector<2x8x64xf32>
    %184 = arith.mulf %0, %183 : vector<2x8x64xf32>
    %cst_50 = arith.constant dense<0.000000e+00> : vector<2x64xf32>
    %185 = vector.multi_reduction <add>, %184, %cst_50 [1] : vector<2x8x64xf32> to vector<2x64xf32>
    %cst_51 = arith.constant 2.000000e+00 : f32
    %186 = vector.broadcast %cst_51 : f32 to vector<2x64xf32>
    %187 = arith.mulf %186, %185 : vector<2x64xf32>
    %188 = arith.subf %2, %187 : vector<2x64xf32>
    %189 = vector.broadcast %182 : vector<2x1xf32> to vector<2x64xf32>
    %190 = arith.addf %188, %189 : vector<2x64xf32>
    %191 = arith.minimumf %156, %190 : vector<2x64xf32>
    %cst_52 = arith.constant dense<0xFF800000> : vector<2xf32>
    %192 = vector.multi_reduction <maximumf>, %191, %cst_52 [1] : vector<2x64xf32> to vector<2xf32>
    %193 = vector.shape_cast %192 : vector<2xf32> to vector<2x1xf32>
    %194 = vector.broadcast %193 : vector<2x1xf32> to vector<2x64xf32>
    %195 = arith.cmpf oeq, %191, %194 : vector<2x64xf32>
    %c64_i32_53 = arith.constant 64 : i32
    %196 = vector.broadcast %c64_i32_53 : i32 to vector<2x64xi32>
    %197 = arith.select %195, %3, %196 : vector<2x64xi1>, vector<2x64xi32>
    %cst_54 = arith.constant dense<2147483647> : vector<2xi32>
    %198 = vector.multi_reduction <minsi>, %197, %cst_54 [1] : vector<2x64xi32> to vector<2xi32>
    %199 = vector.shape_cast %198 : vector<2xi32> to vector<2x1xi32>
    %c5_i32 = arith.constant 5 : i32
    %200 = vector.broadcast %c5_i32 : i32 to vector<2x128xi32>
    %201 = arith.cmpi eq, %4, %200 : vector<2x128xi32>
    %202 = vector.shape_cast %199 : vector<2x1xi32> to vector<2x1xi32>
    %203 = vector.broadcast %202 : vector<2x1xi32> to vector<2x128xi32>
    %204 = arith.select %201, %203, %169 : vector<2x128xi1>, vector<2x128xi32>
    %205 = vector.broadcast %199 : vector<2x1xi32> to vector<2x64xi32>
    %206 = arith.cmpi eq, %3, %205 : vector<2x64xi32>
    %207 = vector.shape_cast %206 : vector<2x64xi1> to vector<2x1x64xi1>
    %cst_55 = arith.constant 0.000000e+00 : f32
    %208 = vector.shape_cast %207 : vector<2x1x64xi1> to vector<2x1x64xi1>
    %209 = vector.broadcast %208 : vector<2x1x64xi1> to vector<2x8x64xi1>
    %210 = vector.broadcast %cst_55 : f32 to vector<2x8x64xf32>
    %211 = arith.select %209, %0, %210 : vector<2x8x64xi1>, vector<2x8x64xf32>
    %cst_56 = arith.constant dense<0.000000e+00> : vector<2x8xf32>
    %212 = vector.multi_reduction <add>, %211, %cst_56 [2] : vector<2x8x64xf32> to vector<2x8xf32>
    %213 = vector.shape_cast %212 : vector<2x8xf32> to vector<2x8x1xf32>
    %cst_57 = arith.constant 0.000000e+00 : f32
    %214 = vector.broadcast %cst_57 : f32 to vector<2x64xf32>
    %215 = arith.select %206, %2, %214 : vector<2x64xi1>, vector<2x64xf32>
    %cst_58 = arith.constant dense<0.000000e+00> : vector<2xf32>
    %216 = vector.multi_reduction <add>, %215, %cst_58 [1] : vector<2x64xf32> to vector<2xf32>
    %217 = vector.shape_cast %216 : vector<2xf32> to vector<2x1xf32>
    %218 = vector.broadcast %213 : vector<2x8x1xf32> to vector<2x8x64xf32>
    %219 = arith.mulf %0, %218 : vector<2x8x64xf32>
    %cst_59 = arith.constant dense<0.000000e+00> : vector<2x64xf32>
    %220 = vector.multi_reduction <add>, %219, %cst_59 [1] : vector<2x8x64xf32> to vector<2x64xf32>
    %cst_60 = arith.constant 2.000000e+00 : f32
    %221 = vector.broadcast %cst_60 : f32 to vector<2x64xf32>
    %222 = arith.mulf %221, %220 : vector<2x64xf32>
    %223 = arith.subf %2, %222 : vector<2x64xf32>
    %224 = vector.broadcast %217 : vector<2x1xf32> to vector<2x64xf32>
    %225 = arith.addf %223, %224 : vector<2x64xf32>
    %226 = arith.minimumf %191, %225 : vector<2x64xf32>
    %cst_61 = arith.constant dense<0xFF800000> : vector<2xf32>
    %227 = vector.multi_reduction <maximumf>, %226, %cst_61 [1] : vector<2x64xf32> to vector<2xf32>
    %228 = vector.shape_cast %227 : vector<2xf32> to vector<2x1xf32>
    %229 = vector.broadcast %228 : vector<2x1xf32> to vector<2x64xf32>
    %230 = arith.cmpf oeq, %226, %229 : vector<2x64xf32>
    %c64_i32_62 = arith.constant 64 : i32
    %231 = vector.broadcast %c64_i32_62 : i32 to vector<2x64xi32>
    %232 = arith.select %230, %3, %231 : vector<2x64xi1>, vector<2x64xi32>
    %cst_63 = arith.constant dense<2147483647> : vector<2xi32>
    %233 = vector.multi_reduction <minsi>, %232, %cst_63 [1] : vector<2x64xi32> to vector<2xi32>
    %234 = vector.shape_cast %233 : vector<2xi32> to vector<2x1xi32>
    %c6_i32 = arith.constant 6 : i32
    %235 = vector.broadcast %c6_i32 : i32 to vector<2x128xi32>
    %236 = arith.cmpi eq, %4, %235 : vector<2x128xi32>
    %237 = vector.shape_cast %234 : vector<2x1xi32> to vector<2x1xi32>
    %238 = vector.broadcast %237 : vector<2x1xi32> to vector<2x128xi32>
    %239 = arith.select %236, %238, %204 : vector<2x128xi1>, vector<2x128xi32>
    %240 = vector.broadcast %234 : vector<2x1xi32> to vector<2x64xi32>
    %241 = arith.cmpi eq, %3, %240 : vector<2x64xi32>
    %242 = vector.shape_cast %241 : vector<2x64xi1> to vector<2x1x64xi1>
    %cst_64 = arith.constant 0.000000e+00 : f32
    %243 = vector.shape_cast %242 : vector<2x1x64xi1> to vector<2x1x64xi1>
    %244 = vector.broadcast %243 : vector<2x1x64xi1> to vector<2x8x64xi1>
    %245 = vector.broadcast %cst_64 : f32 to vector<2x8x64xf32>
    %246 = arith.select %244, %0, %245 : vector<2x8x64xi1>, vector<2x8x64xf32>
    %cst_65 = arith.constant dense<0.000000e+00> : vector<2x8xf32>
    %247 = vector.multi_reduction <add>, %246, %cst_65 [2] : vector<2x8x64xf32> to vector<2x8xf32>
    %248 = vector.shape_cast %247 : vector<2x8xf32> to vector<2x8x1xf32>
    %cst_66 = arith.constant 0.000000e+00 : f32
    %249 = vector.broadcast %cst_66 : f32 to vector<2x64xf32>
    %250 = arith.select %241, %2, %249 : vector<2x64xi1>, vector<2x64xf32>
    %cst_67 = arith.constant dense<0.000000e+00> : vector<2xf32>
    %251 = vector.multi_reduction <add>, %250, %cst_67 [1] : vector<2x64xf32> to vector<2xf32>
    %252 = vector.shape_cast %251 : vector<2xf32> to vector<2x1xf32>
    %253 = vector.broadcast %248 : vector<2x8x1xf32> to vector<2x8x64xf32>
    %254 = arith.mulf %0, %253 : vector<2x8x64xf32>
    %cst_68 = arith.constant dense<0.000000e+00> : vector<2x64xf32>
    %255 = vector.multi_reduction <add>, %254, %cst_68 [1] : vector<2x8x64xf32> to vector<2x64xf32>
    %cst_69 = arith.constant 2.000000e+00 : f32
    %256 = vector.broadcast %cst_69 : f32 to vector<2x64xf32>
    %257 = arith.mulf %256, %255 : vector<2x64xf32>
    %258 = arith.subf %2, %257 : vector<2x64xf32>
    %259 = vector.broadcast %252 : vector<2x1xf32> to vector<2x64xf32>
    %260 = arith.addf %258, %259 : vector<2x64xf32>
    %261 = arith.minimumf %226, %260 : vector<2x64xf32>
    %cst_70 = arith.constant dense<0xFF800000> : vector<2xf32>
    %262 = vector.multi_reduction <maximumf>, %261, %cst_70 [1] : vector<2x64xf32> to vector<2xf32>
    %263 = vector.shape_cast %262 : vector<2xf32> to vector<2x1xf32>
    %264 = vector.broadcast %263 : vector<2x1xf32> to vector<2x64xf32>
    %265 = arith.cmpf oeq, %261, %264 : vector<2x64xf32>
    %c64_i32_71 = arith.constant 64 : i32
    %266 = vector.broadcast %c64_i32_71 : i32 to vector<2x64xi32>
    %267 = arith.select %265, %3, %266 : vector<2x64xi1>, vector<2x64xi32>
    %cst_72 = arith.constant dense<2147483647> : vector<2xi32>
    %268 = vector.multi_reduction <minsi>, %267, %cst_72 [1] : vector<2x64xi32> to vector<2xi32>
    %269 = vector.shape_cast %268 : vector<2xi32> to vector<2x1xi32>
    %c7_i32 = arith.constant 7 : i32
    %270 = vector.broadcast %c7_i32 : i32 to vector<2x128xi32>
    %271 = arith.cmpi eq, %4, %270 : vector<2x128xi32>
    %272 = vector.shape_cast %269 : vector<2x1xi32> to vector<2x1xi32>
    %273 = vector.broadcast %272 : vector<2x1xi32> to vector<2x128xi32>
    %274 = arith.select %271, %273, %239 : vector<2x128xi1>, vector<2x128xi32>
    %275 = vector.broadcast %269 : vector<2x1xi32> to vector<2x64xi32>
    %276 = arith.cmpi eq, %3, %275 : vector<2x64xi32>
    %277 = vector.shape_cast %276 : vector<2x64xi1> to vector<2x1x64xi1>
    %cst_73 = arith.constant 0.000000e+00 : f32
    %278 = vector.shape_cast %277 : vector<2x1x64xi1> to vector<2x1x64xi1>
    %279 = vector.broadcast %278 : vector<2x1x64xi1> to vector<2x8x64xi1>
    %280 = vector.broadcast %cst_73 : f32 to vector<2x8x64xf32>
    %281 = arith.select %279, %0, %280 : vector<2x8x64xi1>, vector<2x8x64xf32>
    %cst_74 = arith.constant dense<0.000000e+00> : vector<2x8xf32>
    %282 = vector.multi_reduction <add>, %281, %cst_74 [2] : vector<2x8x64xf32> to vector<2x8xf32>
    %283 = vector.shape_cast %282 : vector<2x8xf32> to vector<2x8x1xf32>
    %cst_75 = arith.constant 0.000000e+00 : f32
    %284 = vector.broadcast %cst_75 : f32 to vector<2x64xf32>
    %285 = arith.select %276, %2, %284 : vector<2x64xi1>, vector<2x64xf32>
    %cst_76 = arith.constant dense<0.000000e+00> : vector<2xf32>
    %286 = vector.multi_reduction <add>, %285, %cst_76 [1] : vector<2x64xf32> to vector<2xf32>
    %287 = vector.shape_cast %286 : vector<2xf32> to vector<2x1xf32>
    %288 = vector.broadcast %283 : vector<2x8x1xf32> to vector<2x8x64xf32>
    %289 = arith.mulf %0, %288 : vector<2x8x64xf32>
    %cst_77 = arith.constant dense<0.000000e+00> : vector<2x64xf32>
    %290 = vector.multi_reduction <add>, %289, %cst_77 [1] : vector<2x8x64xf32> to vector<2x64xf32>
    %cst_78 = arith.constant 2.000000e+00 : f32
    %291 = vector.broadcast %cst_78 : f32 to vector<2x64xf32>
    %292 = arith.mulf %291, %290 : vector<2x64xf32>
    %293 = arith.subf %2, %292 : vector<2x64xf32>
    %294 = vector.broadcast %287 : vector<2x1xf32> to vector<2x64xf32>
    %295 = arith.addf %293, %294 : vector<2x64xf32>
    %296 = arith.minimumf %261, %295 : vector<2x64xf32>
    %cst_79 = arith.constant dense<0xFF800000> : vector<2xf32>
    %297 = vector.multi_reduction <maximumf>, %296, %cst_79 [1] : vector<2x64xf32> to vector<2xf32>
    %298 = vector.shape_cast %297 : vector<2xf32> to vector<2x1xf32>
    %299 = vector.broadcast %298 : vector<2x1xf32> to vector<2x64xf32>
    %300 = arith.cmpf oeq, %296, %299 : vector<2x64xf32>
    %c64_i32_80 = arith.constant 64 : i32
    %301 = vector.broadcast %c64_i32_80 : i32 to vector<2x64xi32>
    %302 = arith.select %300, %3, %301 : vector<2x64xi1>, vector<2x64xi32>
    %cst_81 = arith.constant dense<2147483647> : vector<2xi32>
    %303 = vector.multi_reduction <minsi>, %302, %cst_81 [1] : vector<2x64xi32> to vector<2xi32>
    %304 = vector.shape_cast %303 : vector<2xi32> to vector<2x1xi32>
    %c8_i32 = arith.constant 8 : i32
    %c0_82 = arith.constant 0 : index
    %c0_83 = arith.constant 0 : index
    %c0_84 = arith.constant 0 : index
    %305 = vector.load %arg3[%c0_82, %c0_83, %c0_84] : memref<1x2x128xi32, #tpu.memory_space<vmem>>, vector<1x2x128xi32>
    %306 = vector.shape_cast %305 : vector<1x2x128xi32> to vector<2x128xi32>
    %307 = vector.shape_cast %274 : vector<2x128xi32> to vector<1x2x128xi32>
    tpu.vector_store %arg3[%c0_82, %c0_83, %c0_84], %307 {strides = array<i32>} : memref<1x2x128xi32, #tpu.memory_space<vmem>>, vector<1x2x128xi32>,
    return
  }
  func.func @transform_0(%arg0: i32, %arg1: memref<4xi32, #tpu.memory_space<smem>>) -> (i32, i32, i32) {
    %c0_i32 = arith.constant 0 : i32
    %c0_i32_0 = arith.constant 0 : i32
    %c0_i32_1 = arith.constant 0 : i32
    return %arg0, %c0_i32, %c0_i32_0 : i32, i32, i32
  }
  func.func @transform_1(%arg0: i32, %arg1: memref<4xi32, #tpu.memory_space<smem>>) -> (i32, i32, i32) {
    %c0_i32 = arith.constant 0 : i32
    %c0_i32_0 = arith.constant 0 : i32
    %c0_i32_1 = arith.constant 0 : i32
    return %arg0, %c0_i32, %c0_i32_0 : i32, i32, i32
  }
}

</mosaic_0001>

<llo_original>
// kernel: tpu_custom_call.1
$region0: #{tpu_custom_call.1}
  #allocation0 [shape = 'u32[]', space=smem, size = 0x4, offset = 0x4, fixed_abs, tag = 'smem constant byte address 0x4 - core index']
  #allocation1 [shape = 'u32[144,128]{1,0:T(1,128)}', space=vmem, size = 0x12000, scoped, tag = 'internal scratch']
  #allocation2 [shape = 's32[1]{0}', space=sflag, size = 0x4, scoped, tag = 'scoped memory for tpu_custom_call.1']
  #allocation3 [shape = 'u8[512]{0}', space=smem, size = 0x200, scoped, tag = 'prefetched SMEM operand 0']
  %s0 = inlined_call_operand.hbm [shape: s32[4], index: 0, kind: input, shape index: {}]
  %s1 = inlined_call_operand.hbm [shape: f32[4,8,64], index: 1, kind: input, shape index: {}]
  %s2 = inlined_call_operand.hbm [shape: s32[2,2,128], index: 2, kind: output, shape index: {}]
  %s3 = sld [smem:[#allocation0]]
  $region41: #{tpu_custom_call.1} parent=0
    _
  %s5 = ssub.s32 1, %s3
  %s6 = scalar_select 0, %s5, %s3
  %8 = dma.hbm_to_smem %s0, 16, [#allocation3], [#allocation2]
  %9 = dma.done [#allocation2], 16
  %10 = sfence
  $region1: #{tpu_custom_call.1} parent=0
    #allocation4 [shape = 'u8[16384]{0}', space=vmem, size = 0x4000, scoped, tag = 'input window, operand 1']
    #allocation5 [shape = 's32[2]{0}', space=sflag, size = 0x8, scoped, tag = 'scoped memory for tpu_custom_call.1']
    #allocation6 [shape = 's32[2]{0}', space=sflag, size = 0x8, scoped, tag = 'scoped memory for tpu_custom_call.1']
    #allocation7 [shape = 'u8[2048]{0}', space=vmem, size = 0x800, scoped, tag = 'output window, operand 0']
    %11 = vsyncpa [#allocation5], 0
    %s12 = scalar_lea.sflag [#allocation5], 1
    %13 = vsyncpa %s12, 0
    %14 = vsyncpa [#allocation6], 0
    %s15 = scalar_lea.sflag [#allocation6], 1
    %16 = vsyncpa %s15, 0
    loop: start=0, step=1, limit=4
    $region2: #{tpu_custom_call.1} parent=1 // loop_pre_header
      _
    $region3: #{tpu_custom_call.1} parent=1 // loop_header
      %s18 = sphi 0, %s22
      %p19 = scmp.ge.s32.totalorder %s18, 4
      %s28 = sphi 0, %s30
      %s31 = sphi 0, %s28
      %s32 = sphi 0, %s31
      %s48 = sphi 0, %s32
      %s54 = sphi 0, %s56
      %s57 = sphi 0, %s54
      %s58 = sphi 0, %s57
      %s74 = sphi 0, %s58
    $region4: #{tpu_custom_call.1} parent=1 // loop_header_branch
      %21 = sbr.rel (%p19) target = $region8
    $region5: #{tpu_custom_call.1} parent=1 // loop_body
      %s23 = ssub.s32 %s18, 1
      %s24 = ssub.s32 %s18, 2
      %s25 = sadd.s32 %s18, 1
      %s26 = ssub.s32 %s18, %s25
      %p27 = scmp.eq.s32.totalorder %s26, 0
      %s29 = sadd.s32 %s28, 1
      %s30 = scalar_select %p27, %s28, %s29
      %p33 = pneg %p27
      %p34 = scmp.eq.s32.totalorder %s18, 1
      %p35 = por %p33, %p34
      %p36 = scmp.ne.s32.totalorder %s28, %s31
      %p37 = scmp.eq.s32.totalorder %s18, 0
      %p38 = por %p36, %p37
      %p39 = scmp.ne.s32.totalorder %s28, %s31
      %p40 = scmp.eq.s32.totalorder %s23, 1
      %p41 = por %p39, %p40
      %p42 = scmp.ne.s32.totalorder %s31, %s32
      %p43 = scmp.eq.s32.totalorder %s23, 0
      %p44 = por %p42, %p43
      %p45 = scmp.ne.s32.totalorder %s31, %s32
      %p46 = scmp.eq.s32.totalorder %s24, 1
      %p47 = por %p45, %p46
      %p49 = scmp.ne.s32.totalorder %s32, %s48
      %p50 = scmp.eq.s32.totalorder %s24, 0
      %p51 = por %p49, %p50
      %s52 = ssub.s32 %s18, %s25
      %p53 = scmp.eq.s32.totalorder %s52, 0
      %s55 = sadd.s32 %s54, 1
      %s56 = scalar_select %p53, %s54, %s55
      %p59 = pneg %p53
      %p60 = scmp.eq.s32.totalorder %s18, 1
      %p61 = por %p59, %p60
      %p62 = scmp.ne.s32.totalorder %s54, %s57
      %p63 = scmp.eq.s32.totalorder %s18, 0
      %p64 = por %p62, %p63
      %p65 = scmp.ne.s32.totalorder %s54, %s57
      %p66 = scmp.eq.s32.totalorder %s23, 1
      %p67 = por %p65, %p66
      %p68 = scmp.ne.s32.totalorder %s57, %s58
      %p69 = scmp.eq.s32.totalorder %s23, 0
      %p70 = por %p68, %p69
      %p71 = scmp.ne.s32.totalorder %s57, %s58
      %p72 = scmp.eq.s32.totalorder %s24, 1
      %p73 = por %p71, %p72
      %p75 = scmp.ne.s32.totalorder %s58, %s74
      %p76 = scmp.eq.s32.totalorder %s24, 0
      %p77 = por %p75, %p76
      %p78 = scmp.le.s32.totalorder 1, %s18
      %p79 = scmp.lt.s32.totalorder %s18, 3
      %p80 = pnand %p78, %p79
      %p81 = pneg %p80
      // Predicated region
      $region9: #{tpu_custom_call.1} parent=5 // pred_check
        _
      $region10: #{tpu_custom_call.1} parent=5 // pred_check_branch
        %83 = sbr.rel (%p80) target = $region12
      $region11: #{tpu_custom_call.1} parent=5 // pred_region
        %s84 = ssub.s32 %s18, 1
      $region12: #{tpu_custom_call.1} parent=5 // pred_fallthru
        _
      %p85 = scmp.lt.s32.totalorder %s18, 2
      // Predicated region
      $region13: #{tpu_custom_call.1} parent=5 // pred_check
        %p86 = pneg %p85
      $region14: #{tpu_custom_call.1} parent=5 // pred_check_branch
        %88 = sbr.rel (%p86) target = $region16
      $region15: #{tpu_custom_call.1} parent=5 // pred_region
        // Predicated region
        $region17: #{tpu_custom_call.1} parent=15 // pred_check
          %p89 = pneg %p38
        $region18: #{tpu_custom_call.1} parent=15 // pred_check_branch
          %91 = sbr.rel (%p89) target = $region20
        $region19: #{tpu_custom_call.1} parent=15 // pred_region
          %s92 = sand.u32 %s28, 1
          %s93 = scalar_lea.sflag [#allocation5], %s92
          %s94 = sand.u32 %s28, 1
          %s95 = smul.addr %s94, 16
          %s96 = scalar_lea.vmem [#allocation4], %s95
          %s97 = smul.u32 2, %s18
          %s99 = ssub.s32 256, 256
          %100 = vsyncadd %s93, %s99
          %s101 = smul.addr %s97, 128
          %s102 = scalar_lea.hbm %s1, %s101
          %s103 = sshll.u32 %s96, 4
          %s104 = int_to_ptr.vmem [resolvable:$true] %s103
          %109 = dma.hbm_to_vmem [thread:$0]  %s102, 256, %s104, %s93, 128, 128, 8
        $region20: #{tpu_custom_call.1} parent=15 // pred_fallthru
          _
      $region16: #{tpu_custom_call.1} parent=5 // pred_fallthru
        _
      %p110 = scmp.le.s32.totalorder 1, %s18
      %p111 = scmp.lt.s32.totalorder %s18, 3
      %p112 = pnand %p110, %p111
      %p113 = pneg %p112
      // Predicated region
      $region21: #{tpu_custom_call.1} parent=5 // pred_check
        _
      $region22: #{tpu_custom_call.1} parent=5 // pred_check_branch
        %115 = sbr.rel (%p112) target = $region24
      $region23: #{tpu_custom_call.1} parent=5 // pred_region
        %s116 = ssub.s32 %s18, 1
        %s117 = sand.u32 %s31, 1
        %s118 = scalar_lea.sflag [#allocation5], %s117
        %s119 = sand.u32 %s31, 1
        %s120 = smul.addr %s119, 16
        %s121 = scalar_lea.vmem [#allocation4], %s120
        // Predicated region
        $region25: #{tpu_custom_call.1} parent=23 // pred_check
          %p122 = pneg %p44
        $region26: #{tpu_custom_call.1} parent=23 // pred_check_branch
          %124 = sbr.rel (%p122) target = $region28
        $region27: #{tpu_custom_call.1} parent=23 // pred_region
          %125 = dma.done %s118, 256
        $region28: #{tpu_custom_call.1} parent=23 // pred_fallthru
          _
        %s126 = sand.u32 %s31, 1
        %s127 = scalar_lea.sflag [#allocation5], %s126
        %s128 = sand.u32 %s31, 1
        %s129 = smul.addr %s128, 16
        %s130 = scalar_lea.vmem [#allocation4], %s129
        %p131 = pneg %p44
        %p132 = pneg %p41
        %p133 = pneg %p70
        %p134 = pneg %p67
        %s135 = sand.u32 %s57, 1
        %s136 = scalar_lea.sflag [#allocation6], %s135
        %s137 = sand.u32 %s57, 1
        %s138 = smul.addr %s137, 2
        %s139 = scalar_lea.vmem [#allocation7], %s138
        %s140 = smul.u32 2, %s23
        %v141 = vld [vmem:[%s121] sm:$0xff]
        %v142 = vld [vmem:[%s121 + $0x8] sm:$0xff]
        %v143 = vmul.f32 %v141, %v141
        %v144 = vmul.f32 %v142, %v142
        %vm145 = vcmask 523264
        %v146 = vsel %vm145, %v143, 0.0
        %v147 = vrot.slane %v146, 4
        %v148 = vadd.f32 %v146, %v147
        %v149 = vrot.slane %v148, 2
        %v150 = vadd.f32 %v148, %v149
        %v151 = vrot.slane %v150, 1
        %v152 = vadd.f32 %v150, %v151
        %v153 = vsel %vm145, %v144, 0.0
        %v154 = vrot.slane %v153, 4
        %v155 = vadd.f32 %v153, %v154
        %v156 = vrot.slane %v155, 2
        %v157 = vadd.f32 %v155, %v156
        %v158 = vrot.slane %v157, 1
        %v159 = vadd.f32 %v157, %v158
        %v160 = vlaneseq
        %v161 = vand.u32 %v160, 127
        %v162 = vlaneseq
        %v163 = vshrl.u32 %v162, 7
        %s164 = smul.u32 %s23, 2
        %s165 = sld [smem:[#allocation3 + %s164]]
        %vm166 = vcmp.eq.s32.totalorder %v163, 0
        %v167 = vstv %s165
        %v168 = vsel %vm166, %v167, 0
        %s169 = sadd.s32 %s164, 1
        %s170 = sld [smem:[#allocation3 + %s169]]
        %vm171 = vcmp.eq.s32.totalorder %v163, 1
        %v172 = vstv %s170
        %v173 = vsel %vm171, %v172, %v168
        %vm174 = vcmp.eq.s32.totalorder %v161, 0
        %v175 = vsel %vm174, %v173, 0
        %vm176 = vcmp.eq.s32.totalorder %v161, %v173
        %v177 = vsel %vm176, 1, 0
        %v179 = vunpack.c.l.s4 1966171168
        %v180 = vunpack.c.0.s8 %v179
        %v181 = vlaneseq
        %v182 = vshrl.u32 %v181, 7
        %v183 = vsub.s32 %v180, %v182
        %v184 = vrot.slane %v177, %v183
        %v185 = vcombine.high %v184, %v184
        %v187 = vunpack.c.l.s4 1966171168
        %v188 = vunpack.c.0.s8 %v187
        %v189 = vlaneseq
        %v190 = vshrl.u32 %v189, 7
        %v191 = vsub.s32 %v188, %v190
        %v192 = vrot.slane %v184, %v191
        %v194 = vunpack.c.l.s4 1966171168
        %v195 = vunpack.c.0.s8 %v194
        %v196 = vlaneseq
        %v197 = vshrl.u32 %v196, 7
        %v198 = vsub.s32 %v195, %v197
        %v199 = vrot.slane %v185, %v198
        %vm200 = vcmp.ne.s32.totalorder %v192, 0
        %vm201 = vcmp.ne.s32.totalorder %v199, 0
        %v202 = vsel %vm200, 1, 0
        %v203 = vsel %vm201, 1, 0
        %v204 = vlaneseq
        %v205 = vshrl.u32 %v204, 7
        %v206 = vsub.s32 0, %v205
        %v207 = vrot.slane %v202, %v206
        %v208 = vlaneseq
        %v209 = vshrl.u32 %v208, 7
        %v210 = vsub.s32 0, %v209
        %v211 = vrot.slane %v203, %v210
        %vm212 = vcmp.eq.s32.totalorder %v207, 1
        %vm213 = vcmp.eq.s32.totalorder %v211, 1
        %v214 = vsel %vm212, %v141, 0.0
        %v215 = vsel %vm213, %v142, 0.0
        %v216 = vsel %vm145, %v214, 0.0
        %217 = vadd.xlane.f32.xlu0 %v216
        %v218 = vpop.xlane.xlu0 %217
        %v219 = vsel %vm145, %v215, 0.0
        %220 = vadd.xlane.f32.xlu0 %v219
        %v221 = vpop.xlane.xlu0 %220
        %vm224 = vcmask 1041409
        %v225 = vsel %vm224, %v159, %v152
        %v227 = vsel %vm176, %v225, 0.0
        %vm228 = vcmask 517120
        %v229 = vsel %vm228, %v227, 0.0
        %230 = vadd.xlane.f32.xlu0 %v229
        %v231 = vpop.xlane.xlu0 %230
        %v232 = vmul.f32 %v141, %v218
        %v233 = vmul.f32 %v142, %v221
        %v234 = vsel %vm145, %v232, 0.0
        %v235 = vrot.slane %v234, 4
        %v236 = vadd.f32 %v234, %v235
        %v237 = vrot.slane %v236, 2
        %v238 = vadd.f32 %v236, %v237
        %v239 = vrot.slane %v238, 1
        %v240 = vadd.f32 %v238, %v239
        %v241 = vsel %vm145, %v233, 0.0
        %v242 = vrot.slane %v241, 4
        %v243 = vadd.f32 %v241, %v242
        %v244 = vrot.slane %v243, 2
        %v245 = vadd.f32 %v243, %v244
        %v246 = vrot.slane %v245, 1
        %v247 = vadd.f32 %v245, %v246
        %v248 = vmul.f32 %v240, 2.0
        %v249 = vmul.f32 %v247, 2.0
        %v250 = vsub.f32 %v152, %v248
        %v251 = vsub.f32 %v159, %v249
        %v253 = vrot.slane %v231, 1
        %v256 = vadd.f32 %v250, %v231
        %v257 = vadd.f32 %v251, %v253
        %v260 = vrot.slane %v257, 7
        %v261 = vsel %vm224, %v260, %v256
        %v263 = vsel %vm228, %v261, -inf
        %264 = vmax.xlane.f32.xlu0 %v263
        %v265 = vpop.xlane.xlu0 %264
        %v267 = vrot.slane %v265, 1
        %vm270 = vcmp.eq.f32.partialorder %v256, %v265
        %vm271 = vcmp.eq.f32.partialorder %v257, %v267
        %v272 = vsel %vm270, %v161, 64
        %v273 = vsel %vm271, %v161, 64
        %v274 = vrot.slane %v273, 7
        %v275 = vsel %vm224, %v274, %v272
        %v276 = vsel %vm228, %v275, 2147483647
        %v277 = vand.u32 %v276, 65535
        %v278 = vshra.s32 %v276, 16
        %v279 = vcvt.s32.f32 %v277
        %v280 = vcvt.s32.f32 %v278
        %281 = vmin.xlane.f32.xlu0 %v280
        %v282 = vpop.xlane.xlu0 %281
        %vm283 = vcmp.eq.f32.partialorder %v280, %v282
        %v284 = vsel %vm283, %v279, inf
        %285 = vmin.xlane.f32.xlu0 %v284
        %v286 = vpop.xlane.xlu0 %285
        %v287 = vcvt.f32.s32 %v286
        %v288 = vcvt.f32.s32 %v282
        %v289 = vshll.u32 %v288, 16
        %v290 = vadd.s32 %v289, %v287
        %vm291 = vcmp.eq.s32.totalorder %v161, 1
        %v292 = vsel %vm291, %v290, %v175
        %vm293 = vcmp.eq.s32.totalorder %v161, %v290
        %v294 = vsel %vm293, 1, 0
        %v296 = vunpack.c.l.s4 1966171168
        %v297 = vunpack.c.0.s8 %v296
        %v298 = vlaneseq
        %v299 = vshrl.u32 %v298, 7
        %v300 = vsub.s32 %v297, %v299
        %v301 = vrot.slane %v294, %v300
        %v302 = vcombine.high %v301, %v301
        %v304 = vunpack.c.l.s4 1966171168
        %v305 = vunpack.c.0.s8 %v304
        %v306 = vlaneseq
        %v307 = vshrl.u32 %v306, 7
        %v308 = vsub.s32 %v305, %v307
        %v309 = vrot.slane %v301, %v308
        %v311 = vunpack.c.l.s4 1966171168
        %v312 = vunpack.c.0.s8 %v311
        %v313 = vlaneseq
        %v314 = vshrl.u32 %v313, 7
        %v315 = vsub.s32 %v312, %v314
        %v316 = vrot.slane %v302, %v315
        %vm317 = vcmp.ne.s32.totalorder %v309, 0
        %vm318 = vcmp.ne.s32.totalorder %v316, 0
        %v319 = vsel %vm317, 1, 0
        %v320 = vsel %vm318, 1, 0
        %v321 = vlaneseq
        %v322 = vshrl.u32 %v321, 7
        %v323 = vsub.s32 0, %v322
        %v324 = vrot.slane %v319, %v323
        %v325 = vlaneseq
        %v326 = vshrl.u32 %v325, 7
        %v327 = vsub.s32 0, %v326
        %v328 = vrot.slane %v320, %v327
        %vm329 = vcmp.eq.s32.totalorder %v324, 1
        %vm330 = vcmp.eq.s32.totalorder %v328, 1
        %v331 = vsel %vm329, %v141, 0.0
        %v332 = vsel %vm330, %v142, 0.0
        %v333 = vsel %vm145, %v331, 0.0
        %334 = vadd.xlane.f32.xlu0 %v333
        %v335 = vpop.xlane.xlu0 %334
        %v336 = vsel %vm145, %v332, 0.0
        %337 = vadd.xlane.f32.xlu0 %v336
        %v338 = vpop.xlane.xlu0 %337
        %v339 = vsel %vm293, %v225, 0.0
        %v340 = vsel %vm228, %v339, 0.0
        %341 = vadd.xlane.f32.xlu0 %v340
        %v342 = vpop.xlane.xlu0 %341
        %v343 = vmul.f32 %v141, %v335
        %v344 = vmul.f32 %v142, %v338
        %v345 = vsel %vm145, %v343, 0.0
        %v346 = vrot.slane %v345, 4
        %v347 = vadd.f32 %v345, %v346
        %v348 = vrot.slane %v347, 2
        %v349 = vadd.f32 %v347, %v348
        %v350 = vrot.slane %v349, 1
        %v351 = vadd.f32 %v349, %v350
        %v352 = vsel %vm145, %v344, 0.0
        %v353 = vrot.slane %v352, 4
        %v354 = vadd.f32 %v352, %v353
        %v355 = vrot.slane %v354, 2
        %v356 = vadd.f32 %v354, %v355
        %v357 = vrot.slane %v356, 1
        %v358 = vadd.f32 %v356, %v357
        %v359 = vmul.f32 %v351, 2.0
        %v360 = vmul.f32 %v358, 2.0
        %v361 = vsub.f32 %v152, %v359
        %v362 = vsub.f32 %v159, %v360
        %v364 = vrot.slane %v342, 1
        %v367 = vadd.f32 %v361, %v342
        %v368 = vadd.f32 %v362, %v364
        %v369 = vmin.f32 %v256, %v367
        %v370 = vmin.f32 %v257, %v368
        %v373 = vrot.slane %v370, 7
        %v374 = vsel %vm224, %v373, %v369
        %v376 = vsel %vm228, %v374, -inf
        %377 = vmax.xlane.f32.xlu0 %v376
        %v378 = vpop.xlane.xlu0 %377
        %v380 = vrot.slane %v378, 1
        %vm383 = vcmp.eq.f32.partialorder %v369, %v378
        %vm384 = vcmp.eq.f32.partialorder %v370, %v380
        %v385 = vsel %vm383, %v161, 64
        %v386 = vsel %vm384, %v161, 64
        %v387 = vrot.slane %v386, 7
        %v388 = vsel %vm224, %v387, %v385
        %v389 = vsel %vm228, %v388, 2147483647
        %v390 = vand.u32 %v389, 65535
        %v391 = vshra.s32 %v389, 16
        %v392 = vcvt.s32.f32 %v390
        %v393 = vcvt.s32.f32 %v391
        %394 = vmin.xlane.f32.xlu0 %v393
        %v395 = vpop.xlane.xlu0 %394
        %vm396 = vcmp.eq.f32.partialorder %v393, %v395
        %v397 = vsel %vm396, %v392, inf
        %398 = vmin.xlane.f32.xlu0 %v397
        %v399 = vpop.xlane.xlu0 %398
        %v400 = vcvt.f32.s32 %v399
        %v401 = vcvt.f32.s32 %v395
        %v402 = vshll.u32 %v401, 16
        %v403 = vadd.s32 %v402, %v400
        %vm404 = vcmp.eq.s32.totalorder %v161, 2
        %v405 = vsel %vm404, %v403, %v292
        %vm406 = vcmp.eq.s32.totalorder %v161, %v403
        %v407 = vsel %vm406, 1, 0
        %v409 = vunpack.c.l.s4 1966171168
        %v410 = vunpack.c.0.s8 %v409
        %v411 = vlaneseq
        %v412 = vshrl.u32 %v411, 7
        %v413 = vsub.s32 %v410, %v412
        %v414 = vrot.slane %v407, %v413
        %v415 = vcombine.high %v414, %v414
        %v417 = vunpack.c.l.s4 1966171168
        %v418 = vunpack.c.0.s8 %v417
        %v419 = vlaneseq
        %v420 = vshrl.u32 %v419, 7
        %v421 = vsub.s32 %v418, %v420
        %v422 = vrot.slane %v414, %v421
        %v424 = vunpack.c.l.s4 1966171168
        %v425 = vunpack.c.0.s8 %v424
        %v426 = vlaneseq
        %v427 = vshrl.u32 %v426, 7
        %v428 = vsub.s32 %v425, %v427
        %v429 = vrot.slane %v415, %v428
        %vm430 = vcmp.ne.s32.totalorder %v422, 0
        %vm431 = vcmp.ne.s32.totalorder %v429, 0
        %v432 = vsel %vm430, 1, 0
        %v433 = vsel %vm431, 1, 0
        %v434 = vlaneseq
        %v435 = vshrl.u32 %v434, 7
        %v436 = vsub.s32 0, %v435
        %v437 = vrot.slane %v432, %v436
        %v438 = vlaneseq
        %v439 = vshrl.u32 %v438, 7
        %v440 = vsub.s32 0, %v439
        %v441 = vrot.slane %v433, %v440
        %vm442 = vcmp.eq.s32.totalorder %v437, 1
        %vm443 = vcmp.eq.s32.totalorder %v441, 1
        %v444 = vsel %vm442, %v141, 0.0
        %v445 = vsel %vm443, %v142, 0.0
        %v446 = vsel %vm145, %v444, 0.0
        %447 = vadd.xlane.f32.xlu0 %v446
        %v448 = vpop.xlane.xlu0 %447
        %v449 = vsel %vm145, %v445, 0.0
        %450 = vadd.xlane.f32.xlu0 %v449
        %v451 = vpop.xlane.xlu0 %450
        %v452 = vsel %vm406, %v225, 0.0
        %v453 = vsel %vm228, %v452, 0.0
        %454 = vadd.xlane.f32.xlu0 %v453
        %v455 = vpop.xlane.xlu0 %454
        %v456 = vmul.f32 %v141, %v448
        %v457 = vmul.f32 %v142, %v451
        %v458 = vsel %vm145, %v456, 0.0
        %v459 = vrot.slane %v458, 4
        %v460 = vadd.f32 %v458, %v459
        %v461 = vrot.slane %v460, 2
        %v462 = vadd.f32 %v460, %v461
        %v463 = vrot.slane %v462, 1
        %v464 = vadd.f32 %v462, %v463
        %v465 = vsel %vm145, %v457, 0.0
        %v466 = vrot.slane %v465, 4
        %v467 = vadd.f32 %v465, %v466
        %v468 = vrot.slane %v467, 2
        %v469 = vadd.f32 %v467, %v468
        %v470 = vrot.slane %v469, 1
        %v471 = vadd.f32 %v469, %v470
        %v472 = vmul.f32 %v464, 2.0
        %v473 = vmul.f32 %v471, 2.0
        %v474 = vsub.f32 %v152, %v472
        %v475 = vsub.f32 %v159, %v473
        %v477 = vrot.slane %v455, 1
        %v480 = vadd.f32 %v474, %v455
        %v481 = vadd.f32 %v475, %v477
        %v482 = vmin.f32 %v369, %v480
        %v483 = vmin.f32 %v370, %v481
        %v486 = vrot.slane %v483, 7
        %v487 = vsel %vm224, %v486, %v482
        %v489 = vsel %vm228, %v487, -inf
        %490 = vmax.xlane.f32.xlu0 %v489
        %v491 = vpop.xlane.xlu0 %490
        %v493 = vrot.slane %v491, 1
        %vm496 = vcmp.eq.f32.partialorder %v482, %v491
        %vm497 = vcmp.eq.f32.partialorder %v483, %v493
        %v498 = vsel %vm496, %v161, 64
        %v499 = vsel %vm497, %v161, 64
        %v500 = vrot.slane %v499, 7
        %v501 = vsel %vm224, %v500, %v498
        %v502 = vsel %vm228, %v501, 2147483647
        %v503 = vand.u32 %v502, 65535
        %v504 = vshra.s32 %v502, 16
        %v505 = vcvt.s32.f32 %v503
        %v506 = vcvt.s32.f32 %v504
        %507 = vmin.xlane.f32.xlu0 %v506
        %v508 = vpop.xlane.xlu0 %507
        %vm509 = vcmp.eq.f32.partialorder %v506, %v508
        %v510 = vsel %vm509, %v505, inf
        %511 = vmin.xlane.f32.xlu0 %v510
        %v512 = vpop.xlane.xlu0 %511
        %v513 = vcvt.f32.s32 %v512
        %v514 = vcvt.f32.s32 %v508
        %v515 = vshll.u32 %v514, 16
        %v516 = vadd.s32 %v515, %v513
        %vm517 = vcmp.eq.s32.totalorder %v161, 3
        %v518 = vsel %vm517, %v516, %v405
        %vm519 = vcmp.eq.s32.totalorder %v161, %v516
        %v520 = vsel %vm519, 1, 0
        %v522 = vunpack.c.l.s4 1966171168
        %v523 = vunpack.c.0.s8 %v522
        %v524 = vlaneseq
        %v525 = vshrl.u32 %v524, 7
        %v526 = vsub.s32 %v523, %v525
        %v527 = vrot.slane %v520, %v526
        %v528 = vcombine.high %v527, %v527
        %v530 = vunpack.c.l.s4 1966171168
        %v531 = vunpack.c.0.s8 %v530
        %v532 = vlaneseq
        %v533 = vshrl.u32 %v532, 7
        %v534 = vsub.s32 %v531, %v533
        %v535 = vrot.slane %v527, %v534
        %v537 = vunpack.c.l.s4 1966171168
        %v538 = vunpack.c.0.s8 %v537
        %v539 = vlaneseq
        %v540 = vshrl.u32 %v539, 7
        %v541 = vsub.s32 %v538, %v540
        %v542 = vrot.slane %v528, %v541
        %vm543 = vcmp.ne.s32.totalorder %v535, 0
        %vm544 = vcmp.ne.s32.totalorder %v542, 0
        %v545 = vsel %vm543, 1, 0
        %v546 = vsel %vm544, 1, 0
        %v547 = vlaneseq
        %v548 = vshrl.u32 %v547, 7
        %v549 = vsub.s32 0, %v548
        %v550 = vrot.slane %v545, %v549
        %v551 = vlaneseq
        %v552 = vshrl.u32 %v551, 7
        %v553 = vsub.s32 0, %v552
        %v554 = vrot.slane %v546, %v553
        %vm555 = vcmp.eq.s32.totalorder %v550, 1
        %vm556 = vcmp.eq.s32.totalorder %v554, 1
        %v557 = vsel %vm555, %v141, 0.0
        %v558 = vsel %vm556, %v142, 0.0
        %v559 = vsel %vm145, %v557, 0.0
        %560 = vadd.xlane.f32.xlu0 %v559
        %v561 = vpop.xlane.xlu0 %560
        %v562 = vsel %vm145, %v558, 0.0
        %563 = vadd.xlane.f32.xlu0 %v562
        %v564 = vpop.xlane.xlu0 %563
        %v565 = vsel %vm519, %v225, 0.0
        %v566 = vsel %vm228, %v565, 0.0
        %567 = vadd.xlane.f32.xlu0 %v566
        %v568 = vpop.xlane.xlu0 %567
        %v569 = vmul.f32 %v141, %v561
        %v570 = vmul.f32 %v142, %v564
        %v571 = vsel %vm145, %v569, 0.0
        %v572 = vrot.slane %v571, 4
        %v573 = vadd.f32 %v571, %v572
        %v574 = vrot.slane %v573, 2
        %v575 = vadd.f32 %v573, %v574
        %v576 = vrot.slane %v575, 1
        %v577 = vadd.f32 %v575, %v576
        %v578 = vsel %vm145, %v570, 0.0
        %v579 = vrot.slane %v578, 4
        %v580 = vadd.f32 %v578, %v579
        %v581 = vrot.slane %v580, 2
        %v582 = vadd.f32 %v580, %v581
        %v583 = vrot.slane %v582, 1
        %v584 = vadd.f32 %v582, %v583
        %v585 = vmul.f32 %v577, 2.0
        %v586 = vmul.f32 %v584, 2.0
        %v587 = vsub.f32 %v152, %v585
        %v588 = vsub.f32 %v159, %v586
        %v590 = vrot.slane %v568, 1
        %v593 = vadd.f32 %v587, %v568
        %v594 = vadd.f32 %v588, %v590
        %v595 = vmin.f32 %v482, %v593
        %v596 = vmin.f32 %v483, %v594
        %v599 = vrot.slane %v596, 7
        %v600 = vsel %vm224, %v599, %v595
        %v602 = vsel %vm228, %v600, -inf
        %603 = vmax.xlane.f32.xlu0 %v602
        %v604 = vpop.xlane.xlu0 %603
        %v606 = vrot.slane %v604, 1
        %vm609 = vcmp.eq.f32.partialorder %v595, %v604
        %vm610 = vcmp.eq.f32.partialorder %v596, %v606
        %v611 = vsel %vm609, %v161, 64
        %v612 = vsel %vm610, %v161, 64
        %v613 = vrot.slane %v612, 7
        %v614 = vsel %vm224, %v613, %v611
        %v615 = vsel %vm228, %v614, 2147483647
        %v616 = vand.u32 %v615, 65535
        %v617 = vshra.s32 %v615, 16
        %v618 = vcvt.s32.f32 %v616
        %v619 = vcvt.s32.f32 %v617
        %620 = vmin.xlane.f32.xlu0 %v619
        %v621 = vpop.xlane.xlu0 %620
        %vm622 = vcmp.eq.f32.partialorder %v619, %v621
        %v623 = vsel %vm622, %v618, inf
        %624 = vmin.xlane.f32.xlu0 %v623
        %v625 = vpop.xlane.xlu0 %624
        %v626 = vcvt.f32.s32 %v625
        %v627 = vcvt.f32.s32 %v621
        %v628 = vshll.u32 %v627, 16
        %v629 = vadd.s32 %v628, %v626
        %vm630 = vcmp.eq.s32.totalorder %v161, 4
        %v631 = vsel %vm630, %v629, %v518
        %vm632 = vcmp.eq.s32.totalorder %v161, %v629
        %v633 = vsel %vm632, 1, 0
        %v635 = vunpack.c.l.s4 1966171168
        %v636 = vunpack.c.0.s8 %v635
        %v637 = vlaneseq
        %v638 = vshrl.u32 %v637, 7
        %v639 = vsub.s32 %v636, %v638
        %v640 = vrot.slane %v633, %v639
        %v641 = vcombine.high %v640, %v640
        %v643 = vunpack.c.l.s4 1966171168
        %v644 = vunpack.c.0.s8 %v643
        %v645 = vlaneseq
        %v646 = vshrl.u32 %v645, 7
        %v647 = vsub.s32 %v644, %v646
        %v648 = vrot.slane %v640, %v647
        %v650 = vunpack.c.l.s4 1966171168
        %v651 = vunpack.c.0.s8 %v650
        %v652 = vlaneseq
        %v653 = vshrl.u32 %v652, 7
        %v654 = vsub.s32 %v651, %v653
        %v655 = vrot.slane %v641, %v654
        %vm656 = vcmp.ne.s32.totalorder %v648, 0
        %vm657 = vcmp.ne.s32.totalorder %v655, 0
        %v658 = vsel %vm656, 1, 0
        %v659 = vsel %vm657, 1, 0
        %v660 = vlaneseq
        %v661 = vshrl.u32 %v660, 7
        %v662 = vsub.s32 0, %v661
        %v663 = vrot.slane %v658, %v662
        %v664 = vlaneseq
        %v665 = vshrl.u32 %v664, 7
        %v666 = vsub.s32 0, %v665
        %v667 = vrot.slane %v659, %v666
        %vm668 = vcmp.eq.s32.totalorder %v663, 1
        %vm669 = vcmp.eq.s32.totalorder %v667, 1
        %v670 = vsel %vm668, %v141, 0.0
        %v671 = vsel %vm669, %v142, 0.0
        %v672 = vsel %vm145, %v670, 0.0
        %673 = vadd.xlane.f32.xlu0 %v672
        %v674 = vpop.xlane.xlu0 %673
        %v675 = vsel %vm145, %v671, 0.0
        %676 = vadd.xlane.f32.xlu0 %v675
        %v677 = vpop.xlane.xlu0 %676
        %v678 = vsel %vm632, %v225, 0.0
        %v679 = vsel %vm228, %v678, 0.0
        %680 = vadd.xlane.f32.xlu0 %v679
        %v681 = vpop.xlane.xlu0 %680
        %v682 = vmul.f32 %v141, %v674
        %v683 = vmul.f32 %v142, %v677
        %v684 = vsel %vm145, %v682, 0.0
        %v685 = vrot.slane %v684, 4
        %v686 = vadd.f32 %v684, %v685
        %v687 = vrot.slane %v686, 2
        %v688 = vadd.f32 %v686, %v687
        %v689 = vrot.slane %v688, 1
        %v690 = vadd.f32 %v688, %v689
        %v691 = vsel %vm145, %v683, 0.0
        %v692 = vrot.slane %v691, 4
        %v693 = vadd.f32 %v691, %v692
        %v694 = vrot.slane %v693, 2
        %v695 = vadd.f32 %v693, %v694
        %v696 = vrot.slane %v695, 1
        %v697 = vadd.f32 %v695, %v696
        %v698 = vmul.f32 %v690, 2.0
        %v699 = vmul.f32 %v697, 2.0
        %v700 = vsub.f32 %v152, %v698
        %v701 = vsub.f32 %v159, %v699
        %v703 = vrot.slane %v681, 1
        %v706 = vadd.f32 %v700, %v681
        %v707 = vadd.f32 %v701, %v703
        %v708 = vmin.f32 %v595, %v706
        %v709 = vmin.f32 %v596, %v707
        %v712 = vrot.slane %v709, 7
        %v713 = vsel %vm224, %v712, %v708
        %v715 = vsel %vm228, %v713, -inf
        %716 = vmax.xlane.f32.xlu0 %v715
        %v717 = vpop.xlane.xlu0 %716
        %v719 = vrot.slane %v717, 1
        %vm722 = vcmp.eq.f32.partialorder %v708, %v717
        %vm723 = vcmp.eq.f32.partialorder %v709, %v719
        %v724 = vsel %vm722, %v161, 64
        %v725 = vsel %vm723, %v161, 64
        %v726 = vrot.slane %v725, 7
        %v727 = vsel %vm224, %v726, %v724
        %v728 = vsel %vm228, %v727, 2147483647
        %v729 = vand.u32 %v728, 65535
        %v730 = vshra.s32 %v728, 16
        %v731 = vcvt.s32.f32 %v729
        %v732 = vcvt.s32.f32 %v730
        %733 = vmin.xlane.f32.xlu0 %v732
        %v734 = vpop.xlane.xlu0 %733
        %vm735 = vcmp.eq.f32.partialorder %v732, %v734
        %v736 = vsel %vm735, %v731, inf
        %737 = vmin.xlane.f32.xlu0 %v736
        %v738 = vpop.xlane.xlu0 %737
        %v739 = vcvt.f32.s32 %v738
        %v740 = vcvt.f32.s32 %v734
        %v741 = vshll.u32 %v740, 16
        %v742 = vadd.s32 %v741, %v739
        %vm743 = vcmp.eq.s32.totalorder %v161, 5
        %v744 = vsel %vm743, %v742, %v631
        %vm745 = vcmp.eq.s32.totalorder %v161, %v742
        %v746 = vsel %vm745, 1, 0
        %v748 = vunpack.c.l.s4 1966171168
        %v749 = vunpack.c.0.s8 %v748
        %v750 = vlaneseq
        %v751 = vshrl.u32 %v750, 7
        %v752 = vsub.s32 %v749, %v751
        %v753 = vrot.slane %v746, %v752
        %v754 = vcombine.high %v753, %v753
        %v756 = vunpack.c.l.s4 1966171168
        %v757 = vunpack.c.0.s8 %v756
        %v758 = vlaneseq
        %v759 = vshrl.u32 %v758, 7
        %v760 = vsub.s32 %v757, %v759
        %v761 = vrot.slane %v753, %v760
        %v763 = vunpack.c.l.s4 1966171168
        %v764 = vunpack.c.0.s8 %v763
        %v765 = vlaneseq
        %v766 = vshrl.u32 %v765, 7
        %v767 = vsub.s32 %v764, %v766
        %v768 = vrot.slane %v754, %v767
        %vm769 = vcmp.ne.s32.totalorder %v761, 0
        %vm770 = vcmp.ne.s32.totalorder %v768, 0
        %v771 = vsel %vm769, 1, 0
        %v772 = vsel %vm770, 1, 0
        %v773 = vlaneseq
        %v774 = vshrl.u32 %v773, 7
        %v775 = vsub.s32 0, %v774
        %v776 = vrot.slane %v771, %v775
        %v777 = vlaneseq
        %v778 = vshrl.u32 %v777, 7
        %v779 = vsub.s32 0, %v778
        %v780 = vrot.slane %v772, %v779
        %vm781 = vcmp.eq.s32.totalorder %v776, 1
        %vm782 = vcmp.eq.s32.totalorder %v780, 1
        %v783 = vsel %vm781, %v141, 0.0
        %v784 = vsel %vm782, %v142, 0.0
        %v785 = vsel %vm145, %v783, 0.0
        %786 = vadd.xlane.f32.xlu0 %v785
        %v787 = vpop.xlane.xlu0 %786
        %v788 = vsel %vm145, %v784, 0.0
        %789 = vadd.xlane.f32.xlu0 %v788
        %v790 = vpop.xlane.xlu0 %789
        %v791 = vsel %vm745, %v225, 0.0
        %v792 = vsel %vm228, %v791, 0.0
        %793 = vadd.xlane.f32.xlu0 %v792
        %v794 = vpop.xlane.xlu0 %793
        %v795 = vmul.f32 %v141, %v787
        %v796 = vmul.f32 %v142, %v790
        %v797 = vsel %vm145, %v795, 0.0
        %v798 = vrot.slane %v797, 4
        %v799 = vadd.f32 %v797, %v798
        %v800 = vrot.slane %v799, 2
        %v801 = vadd.f32 %v799, %v800
        %v802 = vrot.slane %v801, 1
        %v803 = vadd.f32 %v801, %v802
        %v804 = vsel %vm145, %v796, 0.0
        %v805 = vrot.slane %v804, 4
        %v806 = vadd.f32 %v804, %v805
        %v807 = vrot.slane %v806, 2
        %v808 = vadd.f32 %v806, %v807
        %v809 = vrot.slane %v808, 1
        %v810 = vadd.f32 %v808, %v809
        %v811 = vmul.f32 %v803, 2.0
        %v812 = vmul.f32 %v810, 2.0
        %v813 = vsub.f32 %v152, %v811
        %v814 = vsub.f32 %v159, %v812
        %v816 = vrot.slane %v794, 1
        %v819 = vadd.f32 %v813, %v794
        %v820 = vadd.f32 %v814, %v816
        %v821 = vmin.f32 %v708, %v819
        %v822 = vmin.f32 %v709, %v820
        %v825 = vrot.slane %v822, 7
        %v826 = vsel %vm224, %v825, %v821
        %v828 = vsel %vm228, %v826, -inf
        %829 = vmax.xlane.f32.xlu0 %v828
        %v830 = vpop.xlane.xlu0 %829
        %v832 = vrot.slane %v830, 1
        %vm835 = vcmp.eq.f32.partialorder %v821, %v830
        %vm836 = vcmp.eq.f32.partialorder %v822, %v832
        %v837 = vsel %vm835, %v161, 64
        %v838 = vsel %vm836, %v161, 64
        %v839 = vrot.slane %v838, 7
        %v840 = vsel %vm224, %v839, %v837
        %v841 = vsel %vm228, %v840, 2147483647
        %v842 = vand.u32 %v841, 65535
        %v843 = vshra.s32 %v841, 16
        %v844 = vcvt.s32.f32 %v842
        %v845 = vcvt.s32.f32 %v843
        %846 = vmin.xlane.f32.xlu0 %v845
        %v847 = vpop.xlane.xlu0 %846
        %vm848 = vcmp.eq.f32.partialorder %v845, %v847
        %v849 = vsel %vm848, %v844, inf
        %850 = vmin.xlane.f32.xlu0 %v849
        %v851 = vpop.xlane.xlu0 %850
        %v852 = vcvt.f32.s32 %v851
        %v853 = vcvt.f32.s32 %v847
        %v854 = vshll.u32 %v853, 16
        %v855 = vadd.s32 %v854, %v852
        %vm856 = vcmp.eq.s32.totalorder %v161, 6
        %v857 = vsel %vm856, %v855, %v744
        %vm858 = vcmp.eq.s32.totalorder %v161, %v855
        %v859 = vsel %vm858, 1, 0
        %v861 = vunpack.c.l.s4 1966171168
        %v862 = vunpack.c.0.s8 %v861
        %v863 = vlaneseq
        %v864 = vshrl.u32 %v863, 7
        %v865 = vsub.s32 %v862, %v864
        %v866 = vrot.slane %v859, %v865
        %v867 = vcombine.high %v866, %v866
        %v869 = vunpack.c.l.s4 1966171168
        %v870 = vunpack.c.0.s8 %v869
        %v871 = vlaneseq
        %v872 = vshrl.u32 %v871, 7
        %v873 = vsub.s32 %v870, %v872
        %v874 = vrot.slane %v866, %v873
        %v876 = vunpack.c.l.s4 1966171168
        %v877 = vunpack.c.0.s8 %v876
        %v878 = vlaneseq
        %v879 = vshrl.u32 %v878, 7
        %v880 = vsub.s32 %v877, %v879
        %v881 = vrot.slane %v867, %v880
        %vm882 = vcmp.ne.s32.totalorder %v874, 0
        %vm883 = vcmp.ne.s32.totalorder %v881, 0
        %v884 = vsel %vm882, 1, 0
        %v885 = vsel %vm883, 1, 0
        %v886 = vlaneseq
        %v887 = vshrl.u32 %v886, 7
        %v888 = vsub.s32 0, %v887
        %v889 = vrot.slane %v884, %v888
        %v890 = vlaneseq
        %v891 = vshrl.u32 %v890, 7
        %v892 = vsub.s32 0, %v891
        %v893 = vrot.slane %v885, %v892
        %vm894 = vcmp.eq.s32.totalorder %v889, 1
        %vm895 = vcmp.eq.s32.totalorder %v893, 1
        %v896 = vsel %vm894, %v141, 0.0
        %v897 = vsel %vm895, %v142, 0.0
        %v898 = vsel %vm145, %v896, 0.0
        %899 = vadd.xlane.f32.xlu0 %v898
        %v900 = vpop.xlane.xlu0 %899
        %v901 = vsel %vm145, %v897, 0.0
        %902 = vadd.xlane.f32.xlu0 %v901
        %v903 = vpop.xlane.xlu0 %902
        %v904 = vsel %vm858, %v225, 0.0
        %v905 = vsel %vm228, %v904, 0.0
        %906 = vadd.xlane.f32.xlu0 %v905
        %v907 = vpop.xlane.xlu0 %906
        %v908 = vmul.f32 %v141, %v900
        %v909 = vmul.f32 %v142, %v903
        %v910 = vsel %vm145, %v908, 0.0
        %v911 = vrot.slane %v910, 4
        %v912 = vadd.f32 %v910, %v911
        %v913 = vrot.slane %v912, 2
        %v914 = vadd.f32 %v912, %v913
        %v915 = vrot.slane %v914, 1
        %v916 = vadd.f32 %v914, %v915
        %v917 = vsel %vm145, %v909, 0.0
        %v918 = vrot.slane %v917, 4
        %v919 = vadd.f32 %v917, %v918
        %v920 = vrot.slane %v919, 2
        %v921 = vadd.f32 %v919, %v920
        %v922 = vrot.slane %v921, 1
        %v923 = vadd.f32 %v921, %v922
        %v924 = vmul.f32 %v916, 2.0
        %v925 = vmul.f32 %v923, 2.0
        %v926 = vsub.f32 %v152, %v924
        %v927 = vsub.f32 %v159, %v925
        %v929 = vrot.slane %v907, 1
        %v932 = vadd.f32 %v926, %v907
        %v933 = vadd.f32 %v927, %v929
        %v934 = vmin.f32 %v821, %v932
        %v935 = vmin.f32 %v822, %v933
        %v938 = vrot.slane %v935, 7
        %v939 = vsel %vm224, %v938, %v934
        %v941 = vsel %vm228, %v939, -inf
        %942 = vmax.xlane.f32.xlu0 %v941
        %v943 = vpop.xlane.xlu0 %942
        %v945 = vrot.slane %v943, 1
        %vm948 = vcmp.eq.f32.partialorder %v934, %v943
        %vm949 = vcmp.eq.f32.partialorder %v935, %v945
        %v950 = vsel %vm948, %v161, 64
        %v951 = vsel %vm949, %v161, 64
        %v952 = vrot.slane %v951, 7
        %v953 = vsel %vm224, %v952, %v950
        %v954 = vsel %vm228, %v953, 2147483647
        %v955 = vand.u32 %v954, 65535
        %v956 = vshra.s32 %v954, 16
        %v957 = vcvt.s32.f32 %v955
        %v958 = vcvt.s32.f32 %v956
        %959 = vmin.xlane.f32.xlu0 %v958
        %v960 = vpop.xlane.xlu0 %959
        %vm961 = vcmp.eq.f32.partialorder %v958, %v960
        %v962 = vsel %vm961, %v957, inf
        %963 = vmin.xlane.f32.xlu0 %v962
        %v964 = vpop.xlane.xlu0 %963
        %v965 = vcvt.f32.s32 %v964
        %v966 = vcvt.f32.s32 %v960
        %v967 = vshll.u32 %v966, 16
        %v968 = vadd.s32 %v967, %v965
        %vm969 = vcmp.eq.s32.totalorder %v161, 7
        %v970 = vsel %vm969, %v968, %v857
        %971 = vst [vmem:[%s139] sm:$0x3] %v970
        %s972 = sand.u32 %s57, 1
        %s973 = scalar_lea.sflag [#allocation6], %s972
        %s974 = sand.u32 %s57, 1
        %s975 = smul.addr %s974, 2
        %s976 = scalar_lea.vmem [#allocation7], %s975
        // Predicated region
        $region29: #{tpu_custom_call.1} parent=23 // pred_check
          %p977 = pneg %p67
        $region30: #{tpu_custom_call.1} parent=23 // pred_check_branch
          %979 = sbr.rel (%p977) target = $region32
        $region31: #{tpu_custom_call.1} parent=23 // pred_region
          %s981 = ssub.s32 32, 32
          %982 = vsyncadd %s973, %s981
          %s983 = smul.addr %s23, 32
          %s984 = scalar_lea.hbm %s2, %s983
          %s986 = sshll.u32 %s976, 4
          %s987 = int_to_ptr.vmem [resolvable:$true] %s986
          %989 = dma.vmem_to_hbm [thread:$0]  %s987, 32, %s984, %s973
        $region32: #{tpu_custom_call.1} parent=23 // pred_fallthru
          _
      $region24: #{tpu_custom_call.1} parent=5 // pred_fallthru
        _
      %p990 = scmp.le.s32.totalorder 2, %s18
      // Predicated region
      $region33: #{tpu_custom_call.1} parent=5 // pred_check
        %p991 = pneg %p990
      $region34: #{tpu_custom_call.1} parent=5 // pred_check_branch
        %993 = sbr.rel (%p991) target = $region36
      $region35: #{tpu_custom_call.1} parent=5 // pred_region
        %s994 = ssub.s32 %s18, 2
        // Predicated region
        $region37: #{tpu_custom_call.1} parent=35 // pred_check
          %p995 = pneg %p73
        $region38: #{tpu_custom_call.1} parent=35 // pred_check_branch
          %997 = sbr.rel (%p995) target = $region40
        $region39: #{tpu_custom_call.1} parent=35 // pred_region
          %s998 = sand.u32 %s58, 1
          %s999 = scalar_lea.sflag [#allocation6], %s998
          %s1000 = sand.u32 %s58, 1
          %s1001 = smul.addr %s1000, 2
          %s1002 = scalar_lea.vmem [#allocation7], %s1001
          %1003 = dma.done %s999, 32
        $region40: #{tpu_custom_call.1} parent=35 // pred_fallthru
          _
      $region36: #{tpu_custom_call.1} parent=5 // pred_fallthru
        _
    $region6: #{tpu_custom_call.1} parent=1 // loop_footer
      %s22 = sadd.s32 1, %s18
    $region7: #{tpu_custom_call.1} parent=1 // loop_footer_branch
      %17 = sbr.rel target = $region3
    $region8: #{tpu_custom_call.1} parent=1 // loop_exit
      _
    %1004 = vsyncpa [#allocation5], 1
    %s1005 = scalar_lea.sflag [#allocation5], 1
    %1006 = vsyncpa %s1005, 1
    %1007 = vsyncpa [#allocation6], 1
    %s1008 = scalar_lea.sflag [#allocation6], 1
    %1009 = vsyncpa %s1008, 1

</llo_original>
